<compile_context>
chip_gen: v7x
topology: tpu7x:2x2x1
jax: 0.10.0
libtpu: 0.0.40
codegen_flags: <defaults>
</compile_context>

<pallas_src>
import jax
import jax.numpy as jnp
from jax.experimental import pallas as pl
from jax.experimental.pallas import tpu as pltpu

INPUT_DIM = 39
OUTPUT_DIM = 64
LEAKY_SLOPE = 0.01  # PyTorch nn.LeakyReLU default negative_slope
BN_EPS = 1e-5       # PyTorch nn.BatchNorm1d default eps

_SUBLANE = 8


def _round_up(n, m):
    return (n + m - 1) // m * m


def basic_block_kernel(x_ref, w_ref, shift_ref, o_ref):
    # x_ref:     [TB, K]   batch tile of the input (K = 39, full array dim)
    # w_ref:     [K,  N]   Linear weight with BN scale folded in (N = 64)
    # shift_ref: [1,  N]   folded bias: b*scale + beta - mean*scale
    # o_ref:     [TB, N]
    y = jnp.dot(x_ref[...], w_ref[...], preferred_element_type=jnp.float32)
    y = y + shift_ref[...]                      # broadcast over the batch tile
    # Dropout(0.5) -> identity in eval mode.
    o_ref[...] = jnp.where(y > 0, y, LEAKY_SLOPE * y).astype(o_ref.dtype)


def fold_params(w, b, gamma, beta, running_mean, running_var, eps=BN_EPS):
    """Fold Linear bias + eval-mode BatchNorm into (W', shift'). Do this ONCE
    for static inference weights, not per forward call."""
    scale = gamma / jnp.sqrt(running_var + eps)            # [N]
    w_folded = (w * scale[None, :]).astype(jnp.float32)    # [K, N]
    shift = (b * scale + (beta - running_mean * scale)).astype(jnp.float32)
    return w_folded, shift.reshape(1, -1)                  # [K,N], [1,N]


def basic_block_forward(x, w_folded, shift, *, block_b=4096):
    """x: [B, in_dim] f32 (zero-copy, no padding); returns [B, out_dim] f32."""
    B, K = x.shape
    N = w_folded.shape[1]

    # Batch tile: multiple of the 8-row sublane, capped so double-buffered
    # x/out tiles stay well inside every generation's scoped-VMEM default
    # (~TB * 2 KiB; TB=4096 -> ~8 MiB).
    TB = _round_up(min(block_b, _round_up(B, _SUBLANE)), _SUBLANE)
    grid = (pl.cdiv(B, TB),)   # ragged final block handled by Pallas

    cost = pl.CostEstimate(
        flops=2 * B * K * N,
        transcendentals=0,
        bytes_accessed=(B * K + K * N + N + B * N) * 4,
    )

    return pl.pallas_call(
        basic_block_kernel,
        out_shape=jax.ShapeDtypeStruct((B, N), jnp.float32),
        grid=grid,
        in_specs=[
            pl.BlockSpec((TB, K), lambda i: (i, 0)),   # x: tiled over batch, zero-copy
            pl.BlockSpec((K, N), lambda i: (0, 0)),    # W': VMEM-resident
            pl.BlockSpec((1, N), lambda i: (0, 0)),    # shift': VMEM-resident
        ],
        out_specs=pl.BlockSpec((TB, N), lambda i: (i, 0)),
        compiler_params=pltpu.CompilerParams(
            dimension_semantics=("parallel",)),        # v7x: 2 TCs split the batch
        cost_estimate=cost,
    )(x, w_folded, shift)


if __name__ == "__main__":
    key = jax.random.PRNGKey(0)
    k_x, k_w, k_b, k_g, k_be, k_rm, k_rv = jax.random.split(key, 7)

    B = 8
    x = jax.random.normal(k_x, (B, INPUT_DIM), dtype=jnp.float32)

    # Deterministic synthetic parameters (shapes from the module's __init__).
    w = jax.random.normal(k_w, (INPUT_DIM, OUTPUT_DIM), dtype=jnp.float32) * 0.1
    b = jax.random.normal(k_b, (OUTPUT_DIM,), dtype=jnp.float32) * 0.1
    gamma = 1.0 + 0.1 * jax.random.normal(k_g, (OUTPUT_DIM,), dtype=jnp.float32)
    beta = 0.1 * jax.random.normal(k_be, (OUTPUT_DIM,), dtype=jnp.float32)
    running_mean = 0.1 * jax.random.normal(k_rm, (OUTPUT_DIM,), dtype=jnp.float32)
    running_var = jnp.abs(jax.random.normal(k_rv, (OUTPUT_DIM,), dtype=jnp.float32)) + 0.5

    # Fold BN + bias once (hoisted out of the per-call path).
    w_folded, shift = fold_params(w, b, gamma, beta, running_mean, running_var)

    out = basic_block_forward(x, w_folded, shift)
    out = jax.block_until_ready(out)

    # Reference check in plain JAX (same eval-mode math).
    y_ref = x @ w + b
    y_ref = (y_ref - running_mean) / jnp.sqrt(running_var + BN_EPS) * gamma + beta
    y_ref = jnp.where(y_ref > 0, y_ref, LEAKY_SLOPE * y_ref)
    assert out.shape == y_ref.shape
    assert jnp.allclose(out, y_ref, atol=1e-4, rtol=1e-4), "mismatch vs reference"

    print("KERNEL_OK")
</pallas_src>

<mosaic_0001>
module attributes {stable_mosaic.version = 11 : i64} {
  func.func @basic_block_kernel(%arg0: i32, %arg1: memref<8x39xf32, #tpu.memory_space<vmem>>, %arg2: memref<39x64xf32, #tpu.memory_space<vmem>>, %arg3: memref<1x64xf32, #tpu.memory_space<vmem>>, %arg4: memref<8x64xf32, #tpu.memory_space<vmem>>) attributes {dimension_semantics = [#tpu.dimension_semantics<parallel>], iteration_bounds = array<i64: 1>, scalar_prefetch = 0 : i64, scratch_operands = 0 : i64, tpu.core_type = #tpu.core_type<tc>, window_params = [{transform_indices = @transform_0, window_bounds = array<i64: 8, 39>}, {pipeline_mode = #tpu.pipeline_mode<synchronous>, transform_indices = @transform_1, window_bounds = array<i64: 39, 64>}, {pipeline_mode = #tpu.pipeline_mode<synchronous>, transform_indices = @transform_2, window_bounds = array<i64: 1, 64>}, {transform_indices = @transform_3, window_bounds = array<i64: 8, 64>}]} {
    %c0 = arith.constant 0 : index
    %c0_0 = arith.constant 0 : index
    %0 = vector.load %arg1[%c0, %c0_0] : memref<8x39xf32, #tpu.memory_space<vmem>>, vector<8x39xf32>
    %c0_1 = arith.constant 0 : index
    %c0_2 = arith.constant 0 : index
    %1 = vector.load %arg2[%c0_1, %c0_2] : memref<39x64xf32, #tpu.memory_space<vmem>>, vector<39x64xf32>
    %cst = arith.constant dense<0.000000e+00> : vector<8x64xf32>
    %2 = tpu.matmul %0, %1, %cst {dimension_numbers = #tpu.dot_dimension_numbers<[1], [0], [0], [1], [0, 0, 1, 1], [], []>} : vector<8x39xf32>, vector<39x64xf32>, vector<8x64xf32> -> vector<8x64xf32>
    %c0_3 = arith.constant 0 : index
    %c0_4 = arith.constant 0 : index
    %3 = vector.load %arg3[%c0_3, %c0_4] : memref<1x64xf32, #tpu.memory_space<vmem>>, vector<1x64xf32>
    %4 = vector.broadcast %3 : vector<1x64xf32> to vector<8x64xf32>
    %5 = arith.addf %2, %4 : vector<8x64xf32>
    %cst_5 = arith.constant 0.000000e+00 : f32
    %6 = vector.broadcast %cst_5 : f32 to vector<8x64xf32>
    %7 = arith.cmpf ogt, %5, %6 : vector<8x64xf32>
    %cst_6 = arith.constant 0.00999999977 : f32
    %8 = vector.broadcast %cst_6 : f32 to vector<8x64xf32>
    %9 = arith.mulf %8, %5 : vector<8x64xf32>
    %10 = arith.select %7, %5, %9 : vector<8x64xi1>, vector<8x64xf32>
    %c0_7 = arith.constant 0 : index
    %c0_8 = arith.constant 0 : index
    %11 = vector.load %arg4[%c0_7, %c0_8] : memref<8x64xf32, #tpu.memory_space<vmem>>, vector<8x64xf32>
    tpu.vector_store %arg4[%c0_7, %c0_8], %10 {strides = array<i32>} : memref<8x64xf32, #tpu.memory_space<vmem>>, vector<8x64xf32>,
    return
  }
  func.func @transform_0(%arg0: i32) -> (i32, i32) {
    %c0_i32 = arith.constant 0 : i32
    %c0_i32_0 = arith.constant 0 : i32
    return %arg0, %c0_i32 : i32, i32
  }
  func.func @transform_1(%arg0: i32) -> (i32, i32) {
    %c0_i32 = arith.constant 0 : i32
    %c0_i32_0 = arith.constant 0 : i32
    %c0_i32_1 = arith.constant 0 : i32
    return %c0_i32, %c0_i32_0 : i32, i32
  }
  func.func @transform_2(%arg0: i32) -> (i32, i32) {
    %c0_i32 = arith.constant 0 : i32
    %c0_i32_0 = arith.constant 0 : i32
    %c0_i32_1 = arith.constant 0 : i32
    return %c0_i32, %c0_i32_0 : i32, i32
  }
  func.func @transform_3(%arg0: i32) -> (i32, i32) {
    %c0_i32 = arith.constant 0 : i32
    %c0_i32_0 = arith.constant 0 : i32
    return %arg0, %c0_i32 : i32, i32
  }
}

</mosaic_0001>

<llo_original>
// kernel: tpu_custom_call.1
$region0: #{tpu_custom_call.1}
  #allocation0 [shape = 'u32[]', space=smem, size = 0x4, offset = 0x4, fixed_abs, tag = 'smem constant byte address 0x4 - core index']
  #allocation1 [shape = 'u32[144,128]{1,0:T(1,128)}', space=vmem, size = 0x12000, scoped, tag = 'internal scratch']
  %s0 = inlined_call_operand.hbm [shape: f32[8,39], index: 0, kind: input, shape index: {}]
  %s1 = inlined_call_operand.hbm [shape: f32[39,64], index: 1, kind: input, shape index: {}]
  %s2 = inlined_call_operand.vmem [shape: f32[1,64], index: 2, kind: input, shape index: {}]
  %s3 = inlined_call_operand.hbm [shape: f32[8,64], index: 3, kind: output, shape index: {}]
  %s4 = sld [smem:[#allocation0]]
  $region30: #{tpu_custom_call.1} parent=0
    _
  %s6 = ssub.s32 1, %s4
  %s7 = scalar_select 0, %s6, %s4
  $region1: #{tpu_custom_call.1} parent=0
    #allocation2 [shape = 'u8[4096]{0}', space=vmem, size = 0x1000, scoped, tag = 'input window, operand 0, single buffered']
    #allocation3 [shape = 's32[1]{0}', space=sflag, size = 0x4, scoped, tag = 'scoped memory for tpu_custom_call.1']
    #allocation4 [shape = 's32[1]{0}', space=sflag, size = 0x4, scoped, tag = 'scoped memory for tpu_custom_call.1']
    #allocation5 [shape = 'u8[20480]{0}', space=vmem, size = 0x5000, scoped, tag = 'input window, operand 1, single buffered']
    #allocation6 [shape = 's32[1]{0}', space=sflag, size = 0x4, scoped, tag = 'scoped memory for tpu_custom_call.1']
    #allocation7 [shape = 'u8[4096]{0}', space=vmem, size = 0x1000, scoped, tag = 'output window, operand 0, single buffered']
    %8 = vsyncpa [#allocation3], 0
    %9 = vsyncpa [#allocation6], 0
    %10 = vsyncpa [#allocation4], 0
    // Predicated region
    $region2: #{tpu_custom_call.1} parent=1 // pred_check
      _
    $region3: #{tpu_custom_call.1} parent=1 // pred_check_branch
      %12 = sbr.rel (0) target = $region5
    $region4: #{tpu_custom_call.1} parent=1 // pred_region
      %s14 = ssub.s32 128, 128
      %15 = vsyncadd [#allocation3], %s14
      %s17 = sshll.u32 [#allocation2], 4
      %s18 = int_to_ptr.vmem [resolvable:$true] %s17
      %20 = dma.hbm_to_vmem [thread:$0]  %s0, 128, %s18, [#allocation3]
    $region5: #{tpu_custom_call.1} parent=1 // pred_fallthru
      _
    // Predicated region
    $region6: #{tpu_custom_call.1} parent=1 // pred_check
      _
    $region7: #{tpu_custom_call.1} parent=1 // pred_check_branch
      %22 = sbr.rel (0) target = $region9
    $region8: #{tpu_custom_call.1} parent=1 // pred_region
      %s24 = ssub.s32 640, 640
      %25 = vsyncadd [#allocation6], %s24
      %s26 = sshll.u32 [#allocation5], 4
      %s27 = int_to_ptr.vmem [resolvable:$true] %s26
      %32 = dma.hbm_to_vmem [thread:$0]  %s1, 640, %s27, [#allocation6], 128, 128, 8
    $region9: #{tpu_custom_call.1} parent=1 // pred_fallthru
      _
    // Predicated region
    $region10: #{tpu_custom_call.1} parent=1 // pred_check
      _
    $region11: #{tpu_custom_call.1} parent=1 // pred_check_branch
      %34 = sbr.rel (0) target = $region13
    $region12: #{tpu_custom_call.1} parent=1 // pred_region
      _
    $region13: #{tpu_custom_call.1} parent=1 // pred_fallthru
      _
    // Predicated region
    $region14: #{tpu_custom_call.1} parent=1 // pred_check
      _
    $region15: #{tpu_custom_call.1} parent=1 // pred_check_branch
      %36 = sbr.rel (0) target = $region17
    $region16: #{tpu_custom_call.1} parent=1 // pred_region
      %37 = dma.done [#allocation3], 128
    $region17: #{tpu_custom_call.1} parent=1 // pred_fallthru
      _
    // Predicated region
    $region18: #{tpu_custom_call.1} parent=1 // pred_check
      _
    $region19: #{tpu_custom_call.1} parent=1 // pred_check_branch
      %39 = sbr.rel (0) target = $region21
    $region20: #{tpu_custom_call.1} parent=1 // pred_region
      %40 = dma.done [#allocation6], 640
    $region21: #{tpu_custom_call.1} parent=1 // pred_fallthru
      _
    %v41 = vld [vmem:[#allocation2] sm:$0xff]
    %v42 = vld [vmem:[#allocation5] sm:$0xff]
    %v43 = vld [vmem:[#allocation5 + $0x8] sm:$0xff]
    %v44 = vld [vmem:[#allocation5 + $0x10] sm:$0xff]
    %v45 = vld [vmem:[#allocation5 + $0x18] sm:$0xff]
    %v46 = vld [vmem:[#allocation5 + $0x20] sm:$0x7f]
    %v47 = vld [vmem:[%s2] sm:$0x1]
    %v49 = vlaneseq
    %v50 = vshrl.u32 %v49, 7
    %v51 = vsub.s32 0, %v50
    %v52 = vrot.slane %v47, %v51
    %vm54 = vcmask 318464
    %v56 = vsel %vm54, %v41, 0
    %vm58 = vcmask 1046528
    %v60 = vsel %vm58, %v46, 0
    %62 = vmatprep.subr.mxu0 0.0
    %63 = vmatpush1.msra.mxu0 %v42
    %64 = vmatprep.subr.mxu0 0.0
    %65 = vmatpush1.msra.mxu0 %v43
    %66 = vmatprep.subr.mxu0 0.0
    %67 = vmatpush1.msra.mxu0 %v44
    %68 = vmatprep.subr.mxu0 0.0
    %69 = vmatpush1.msra.mxu0 %v45
    %70 = vmatprep.subr.mxu0 0.0
    %71 = vmatpush1.msra.mxu0 %v60
    %72 = vmatprep.subr.mxu0 0.0
    %73 = vmatpush1.msra.mxu0 0.0
    %74 = vmatprep.subr.mxu0 0.0
    %75 = vmatpush1.msra.mxu0 0.0
    %76 = vmatprep.subr.mxu0 0.0
    %77 = vmatpush1.msra.mxu0 0.0
    %78 = vmatprep.subr.mxu0 0.0
    %79 = vmatpush1.msra.mxu0 0.0
    %80 = vmatprep.subr.mxu0 0.0
    %81 = vmatpush1.msra.mxu0 0.0
    %82 = vmatprep.subr.mxu0 0.0
    %83 = vmatpush1.msra.mxu0 0.0
    %84 = vmatprep.subr.mxu0 0.0
    %85 = vmatpush1.msra.mxu0 0.0
    %86 = vmatprep.subr.mxu0 0.0
    %87 = vmatpush1.msra.mxu0 0.0
    %88 = vmatprep.subr.mxu0 0.0
    %89 = vmatpush1.msra.mxu0 0.0
    %90 = vmatprep.subr.mxu0 0.0
    %91 = vmatpush1.msra.mxu0 0.0
    %92 = vmatprep.subr.mxu0 0.0
    %93 = vmatpush1.msra.mxu0 0.0
    %94 = vmatprep.subr.mxu0 0.0
    %95 = vmatpush1.msra.mxu0 0.0
    %96 = vmatprep.subr.mxu0 0.0
    %97 = vmatpush1.msra.mxu0 0.0
    %98 = vmatprep.subr.mxu0 0.0
    %99 = vmatpush1.msra.mxu0 0.0
    %100 = vmatprep.subr.mxu0 0.0
    %101 = vmatpush1.msra.mxu0 0.0
    %102 = vmatprep.subr.mxu0 0.0
    %103 = vmatpush1.msra.mxu0 0.0
    %104 = vmatprep.subr.mxu0 0.0
    %105 = vmatpush1.msra.mxu0 0.0
    %106 = vmatprep.subr.mxu0 0.0
    %107 = vmatpush1.msra.mxu0 0.0
    %108 = vmatprep.subr.mxu0 0.0
    %109 = vmatpush1.msra.mxu0 0.0
    %110 = vmatprep.subr.mxu0 0.0
    %111 = vmatpush1.msra.mxu0 0.0
    %112 = vmatprep.subr.mxu0 0.0
    %113 = vmatpush1.msra.mxu0 0.0
    %114 = vmatprep.subr.mxu0 0.0
    %115 = vmatpush1.msra.mxu0 0.0
    %116 = vmatprep.subr.mxu0 0.0
    %117 = vmatpush1.msra.mxu0 0.0
    %118 = vmatprep.subr.mxu0 0.0
    %119 = vmatpush1.msra.mxu0 0.0
    %120 = vmatprep.subr.mxu0 0.0
    %121 = vmatpush1.msra.mxu0 0.0
    %122 = vmatprep.subr.mxu0 0.0
    %123 = vmatpush1.msra.mxu0 0.0
    %124 = vmatprep.subr.mxu0 0.0
    %125 = vmatpush1.msra.mxu0 0.0
    %126 = vmatprep.mubr.f32.mxu0 0.0
    %127 = vmatmul.mubr.f32.gmra.mrb[0].mxu0 %v56
    %v128 = vpop.f32.mrb[0].mxu0
    %v129 = vadd.f32 %v52, %v128
    %v130 = vpop.f32.mrb[0].mxu0
    %131 = vdwg.mxu0
    %vm132 = vcmp.gt.f32.partialorder %v129, 0.0
    %v133 = vmul.f32 %v129, 0.01
    %v134 = vsel %vm132, %v129, %v133
    %vm135 = vcmask 523264
    %136 = vst.msk [vmem:[#allocation7] sm:$0xff] %vm135, %v134
    // Predicated region
    $region22: #{tpu_custom_call.1} parent=1 // pred_check
      _
    $region23: #{tpu_custom_call.1} parent=1 // pred_check_branch
      %138 = sbr.rel (0) target = $region25
    $region24: #{tpu_custom_call.1} parent=1 // pred_region
      %s140 = ssub.s32 128, 128
      %141 = vsyncadd [#allocation4], %s140
      %s143 = sshll.u32 [#allocation7], 4
      %s144 = int_to_ptr.vmem [resolvable:$true] %s143
      %146 = dma.vmem_to_hbm [thread:$0]  %s144, 128, %s3, [#allocation4]
    $region25: #{tpu_custom_call.1} parent=1 // pred_fallthru
      _
    // Predicated region
    $region26: #{tpu_custom_call.1} parent=1 // pred_check
      _
    $region27: #{tpu_custom_call.1} parent=1 // pred_check_branch
      %148 = sbr.rel (0) target = $region29
    $region28: #{tpu_custom_call.1} parent=1 // pred_region
      %149 = dma.done [#allocation4], 128
    $region29: #{tpu_custom_call.1} parent=1 // pred_fallthru
      _
    %150 = vsyncpa [#allocation3], 1
    %151 = vsyncpa [#allocation6], 1
    %152 = vsyncpa [#allocation4], 1

</llo_original>
